<compile_context>
chip_gen: v6e
topology: v6e:2x2x1
jax: 0.10.0
libtpu: 0.0.40
codegen_flags: <defaults>
</compile_context>

<pallas_src>
import functools
import itertools
import math

import jax
import jax.numpy as jnp
from jax.experimental import pallas as pl
from jax.experimental.pallas import tpu as pltpu


# ----------------------------------------------------------------------------
# helpers
# ----------------------------------------------------------------------------
def _round_up(x, m):
    return ((x + m - 1) // m) * m


_VMEM_LIMIT = 48 * 1024 * 1024  # explicit VMEM budget (< v7x 64 MiB physical)


# ----------------------------------------------------------------------------
# Pallas kernel 1: fused GEMM   out = [relu]((L @ R) * scale + bias [+ res])
#   L: (Mpad, Kpad) bf16 patches, R: (Kpad, Npad) bf16 weight,
#   scale/bias: (1, Npad) f32, res: (Mpad, Npad) bf16 or None.
#   Grid (M_tiles, N_tiles); K is a single resident tile (no reduction axis).
# ----------------------------------------------------------------------------
def _gemm_pallas(lhs, rhs, scale, bias, res, relu):
    mpad, kpad = lhs.shape
    _, npad = rhs.shape
    tm = 256 if mpad % 256 == 0 else mpad          # mpad is either mult-of-256 or < 256
    tn = npad if npad <= 512 else 512              # 256-multiple tiles for v6e/v7x MXU
    grid = (mpad // tm, npad // tn)
    has_res = res is not None

    def kernel(*refs):
        if has_res:
            l_ref, r_ref, s_ref, b_ref, d_ref, o_ref = refs
        else:
            l_ref, r_ref, s_ref, b_ref, o_ref = refs
            d_ref = None
        y = jnp.dot(l_ref[...], r_ref[...], preferred_element_type=jnp.float32)
        y = y * s_ref[...] + b_ref[...]
        if has_res:
            y = y + d_ref[...].astype(jnp.float32)
        if relu:
            y = jnp.maximum(y, 0.0)
        o_ref[...] = y.astype(o_ref.dtype)

    in_specs = [
        pl.BlockSpec((tm, kpad), lambda i, j: (i, 0)),
        pl.BlockSpec((kpad, tn), lambda i, j: (0, j)),
        pl.BlockSpec((1, tn), lambda i, j: (0, j)),
        pl.BlockSpec((1, tn), lambda i, j: (0, j)),
    ]
    args = [lhs, rhs, scale, bias]
    if has_res:
        in_specs.append(pl.BlockSpec((tm, tn), lambda i, j: (i, j)))
        args.append(res)

    return pl.pallas_call(
        kernel,
        out_shape=jax.ShapeDtypeStruct((mpad, npad), jnp.bfloat16),
        grid=grid,
        in_specs=in_specs,
        out_specs=pl.BlockSpec((tm, tn), lambda i, j: (i, j)),
        compiler_params=pltpu.CompilerParams(
            dimension_semantics=("parallel", "parallel"),
            vmem_limit_bytes=_VMEM_LIMIT),
    )(*args)


# ----------------------------------------------------------------------------
# im2col + fused conv/bn(/residual)(/relu) wrapper (jitted per shape/meta)
# ----------------------------------------------------------------------------
def _im2col(x, k, stride, pad):  # x: NHWC
    n, h, w, c = x.shape
    if pad:
        x = jnp.pad(x, ((0, 0), (pad, pad), (pad, pad), (0, 0)))
    ho = (h + 2 * pad - k) // stride + 1
    wo = (w + 2 * pad - k) // stride + 1
    # TODO(synk): for 3x3 convs this still materializes a 9x-duplicated patch
    # matrix in HBM; fusing the taps into the kernel's reduction via manual DMA
    # over the padded NHWC activation would remove that traffic.
    cols = [x[:, i:i + stride * (ho - 1) + 1:stride,
              j:j + stride * (wo - 1) + 1:stride, :]
            for i in range(k) for j in range(k)]
    patches = cols[0] if k == 1 else jnp.concatenate(cols, axis=-1)
    return patches.reshape(n * ho * wo, k * k * c), (n, ho, wo)


@functools.partial(jax.jit, static_argnames=("k", "stride", "pad", "relu"))
def _conv_bn_act_impl(x, w, scale, bias, residual, *, k, stride, pad, relu):
    patches, (n, ho, wo) = _im2col(x, k, stride, pad)
    m, kdim = patches.shape
    kpad, npad = w.shape
    m8 = _round_up(m, 8)
    mpad = _round_up(m, 256) if m8 >= 256 else m8
    lhs = patches.astype(jnp.bfloat16)
    if mpad != m or kpad != kdim:          # K-pad only needed for the 7x7 stem (147->256)
        lhs = jnp.pad(lhs, ((0, mpad - m), (0, kpad - kdim)))
    res2d = None
    if residual is not None:
        res2d = residual.astype(jnp.bfloat16).reshape(m, npad)
        if mpad != m:
            res2d = jnp.pad(res2d, ((0, mpad - m), (0, 0)))
    out = _gemm_pallas(lhs, w, scale, bias, res2d, relu)
    return out[:m].reshape(n, ho, wo, npad)   # channels stay padded (zeros) between layers


def _conv_bn_act(x, p, relu=True, residual=None):
    return _conv_bn_act_impl(x, p["w"], p["scale"], p["bias"], residual,
                             k=p["k"], stride=p["stride"], pad=p["pad"], relu=relu)


# ----------------------------------------------------------------------------
# Pallas kernel 2: 3x3 stride-2 pad-1 max pool, tiled over output rows
# ----------------------------------------------------------------------------
@jax.jit
def _maxpool_3x3_s2_p1(x):  # x: NHWC bf16, C multiple of 128
    n, h, w, c = x.shape
    ho = (h + 2 - 3) // 2 + 1
    wo = (w + 2 - 3) // 2 + 1
    neg = jnp.array(-jnp.inf, dtype=x.dtype)
    xp = jnp.pad(x, ((0, 0), (1, 1), (1, 1), (0, 0)), constant_values=neg)
    # TODO(synk): the 9 strided tap views still round-trip HBM once; an
    # in-kernel windowed read over the padded activation would avoid it.
    taps = [xp[:, i:i + 2 * (ho - 1) + 1:2, j:j + 2 * (wo - 1) + 1:2, :]
            for i in range(3) for j in range(3)]
    taps = jnp.stack(taps, axis=0).reshape(9, n * ho * wo, c)
    m = n * ho * wo
    m8 = _round_up(m, 8)
    mpad = _round_up(m, 512) if m8 >= 512 else m8
    tm = 512 if mpad % 512 == 0 else mpad
    if mpad != m:
        taps = jnp.pad(taps, ((0, 0), (0, mpad - m), (0, 0)), constant_values=neg)

    def kernel(t_ref, o_ref):
        o_ref[...] = jnp.max(t_ref[...], axis=0)

    out = pl.pallas_call(
        kernel,
        out_shape=jax.ShapeDtypeStruct((mpad, c), x.dtype),
        grid=(mpad // tm,),
        in_specs=[pl.BlockSpec((9, tm, c), lambda i: (0, i, 0))],
        out_specs=pl.BlockSpec((tm, c), lambda i: (i, 0)),
        compiler_params=pltpu.CompilerParams(
            dimension_semantics=("parallel",),
            vmem_limit_bytes=_VMEM_LIMIT),
    )(taps)
    return out[:m].reshape(n, ho, wo, c)


# ----------------------------------------------------------------------------
# deterministic synthetic parameters (ResNet-101 topology, BN + norm folded)
# ----------------------------------------------------------------------------
_BASE_KEY = jax.random.PRNGKey(0)
_COUNTER = itertools.count()


def _make_conv_bn(cin, cout, k, stride, pad, *, cin_pad=None, in_scale=None):
    idx = next(_COUNTER)
    key = jax.random.fold_in(_BASE_KEY, idx)
    cin_pad = _round_up(cin, 128) if cin_pad is None else cin_pad
    fan_in = cin * k * k
    w = jax.random.normal(key, (cout, cin, k, k), jnp.float32) / math.sqrt(fan_in)
    if in_scale is not None:               # fold e.g. 1/std of the input norm (exact)
        w = w * in_scale.reshape(1, cin, 1, 1)
    # BN eval: y = gamma*(x-mean)/sqrt(var+eps) + beta  ->  y = x*scale + shift
    gamma = jnp.ones((cout,), jnp.float32)
    beta = jnp.zeros((cout,), jnp.float32)
    run_mean = jnp.zeros((cout,), jnp.float32)
    run_var = jnp.ones((cout,), jnp.float32)
    scale = gamma / jnp.sqrt(run_var + 1e-5)
    shift = beta - run_mean * scale
    # GEMM weight laid out (kh, kw, cin_padded) x cout_padded, stored bf16.
    w_p = jnp.pad(w, ((0, 0), (0, cin_pad - cin), (0, 0), (0, 0)))
    kdim = k * k * cin_pad
    kpad = _round_up(kdim, 128)
    npad = _round_up(cout, 128)
    w_gemm = jnp.transpose(w_p, (2, 3, 1, 0)).reshape(kdim, cout)
    w_gemm = jnp.pad(w_gemm, ((0, kpad - kdim), (0, npad - cout)))
    return dict(w=w_gemm.astype(jnp.bfloat16),
                scale=jnp.pad(scale, (0, npad - cout)).reshape(1, npad),
                bias=jnp.pad(shift, (0, npad - cout)).reshape(1, npad),
                k=k, stride=stride, pad=pad, cout=cout)


def build_resnet101_params(use_input_norm=True):
    std = jnp.array([0.229, 0.224, 0.225], jnp.float32)
    params = {
        "mean": jnp.array([0.485, 0.456, 0.406], jnp.float32),
        # 1/std is folded into the stem conv's GEMM weight; only (x - mean) remains.
        "conv1": _make_conv_bn(3, 64, 7, 2, 3, cin_pad=3,
                               in_scale=(1.0 / std) if use_input_norm else None),
    }
    inplanes = 64
    cfg = [(64, 3, 1), (128, 4, 2), (256, 23, 2), (512, 3, 2)]  # ResNet-101
    for li, (planes, blocks, stride) in enumerate(cfg, start=1):
        layer = []
        for b in range(blocks):
            s = stride if b == 0 else 1
            blk = {
                "conv1": _make_conv_bn(inplanes, planes, 1, 1, 0),
                "conv2": _make_conv_bn(planes, planes, 3, s, 1),   # stride on 3x3 (torchvision)
                "conv3": _make_conv_bn(planes, planes * 4, 1, 1, 0),
            }
            if b == 0:
                blk["downsample"] = _make_conv_bn(inplanes, planes * 4, 1, s, 0)
            layer.append(blk)
            inplanes = planes * 4
        params[f"layer{li}"] = layer
    return params


# ----------------------------------------------------------------------------
# forward pass (children()[:8] = conv1, bn1, relu, maxpool, layer1..layer4)
# ----------------------------------------------------------------------------
def _bottleneck(x, blk):
    out = _conv_bn_act(x, blk["conv1"], relu=True)
    out = _conv_bn_act(out, blk["conv2"], relu=True)
    if "downsample" in blk:
        identity = _conv_bn_act(x, blk["downsample"], relu=False)
    else:
        identity = x
    # relu(bn3(conv3(out)) + identity) — fused into the GEMM epilogue
    return _conv_bn_act(out, blk["conv3"], relu=True, residual=identity)


def resnet101_feature_extractor(x_nchw, params, use_input_norm=True):
    x = jnp.transpose(x_nchw.astype(jnp.float32), (0, 2, 3, 1))    # NCHW -> NHWC
    if use_input_norm:
        x = x - params["mean"].reshape(1, 1, 1, 3)   # 1/std already folded into conv1
    x = _conv_bn_act(x, params["conv1"], relu=True)  # -> (N, H/2, W/2, 128) bf16
    x = _maxpool_3x3_s2_p1(x)
    for name in ("layer1", "layer2", "layer3", "layer4"):
        for blk in params[name]:
            x = _bottleneck(x, blk)
    return jnp.transpose(x, (0, 3, 1, 2)).astype(jnp.float32)      # NHWC -> NCHW


# ----------------------------------------------------------------------------
if __name__ == "__main__":
    key = jax.random.PRNGKey(0)
    x = jax.random.uniform(key, (2, 3, 32, 32), jnp.float32)  # small image batch
    params = build_resnet101_params(use_input_norm=True)
    out = resnet101_feature_extractor(x, params)
    out = jax.block_until_ready(out)
    assert out.shape == (2, 2048, 1, 1), out.shape
    assert bool(jnp.all(jnp.isfinite(out)))
    print("KERNEL_OK")
</pallas_src>

<mosaic_0001>
module attributes {stable_mosaic.version = 11 : i64} {
  func.func @kernel(%arg0: i32, %arg1: i32, %arg2: memref<256x256xbf16, #tpu.memory_space<vmem>>, %arg3: memref<256x128xbf16, #tpu.memory_space<vmem>>, %arg4: memref<1x128xf32, #tpu.memory_space<vmem>>, %arg5: memref<1x128xf32, #tpu.memory_space<vmem>>, %arg6: memref<256x128xbf16, #tpu.memory_space<vmem>>) attributes {dimension_semantics = [#tpu.dimension_semantics<parallel>, #tpu.dimension_semantics<parallel>], iteration_bounds = array<i64: 2, 1>, scalar_prefetch = 0 : i64, scratch_operands = 0 : i64, tpu.core_type = #tpu.core_type<tc>, window_params = [{transform_indices = @transform_0, window_bounds = array<i64: 256, 256>}, {transform_indices = @transform_1, window_bounds = array<i64: 256, 128>}, {transform_indices = @transform_2, window_bounds = array<i64: 1, 128>}, {transform_indices = @transform_3, window_bounds = array<i64: 1, 128>}, {transform_indices = @transform_4, window_bounds = array<i64: 256, 128>}]} {
    %c0 = arith.constant 0 : index
    %c0_0 = arith.constant 0 : index
    %0 = vector.load %arg2[%c0, %c0_0] : memref<256x256xbf16, #tpu.memory_space<vmem>>, vector<256x256xbf16>
    %c0_1 = arith.constant 0 : index
    %c0_2 = arith.constant 0 : index
    %1 = vector.load %arg3[%c0_1, %c0_2] : memref<256x128xbf16, #tpu.memory_space<vmem>>, vector<256x128xbf16>
    %cst = arith.constant dense<0.000000e+00> : vector<256x128xf32>
    %2 = tpu.matmul %0, %1, %cst {dimension_numbers = #tpu.dot_dimension_numbers<[1], [0], [0], [1], [0, 0, 1, 1], [], []>} : vector<256x256xbf16>, vector<256x128xbf16>, vector<256x128xf32> -> vector<256x128xf32>
    %c0_3 = arith.constant 0 : index
    %c0_4 = arith.constant 0 : index
    %3 = vector.load %arg4[%c0_3, %c0_4] : memref<1x128xf32, #tpu.memory_space<vmem>>, vector<1x128xf32>
    %4 = vector.broadcast %3 : vector<1x128xf32> to vector<256x128xf32>
    %5 = arith.mulf %2, %4 : vector<256x128xf32>
    %c0_5 = arith.constant 0 : index
    %c0_6 = arith.constant 0 : index
    %6 = vector.load %arg5[%c0_5, %c0_6] : memref<1x128xf32, #tpu.memory_space<vmem>>, vector<1x128xf32>
    %7 = vector.broadcast %6 : vector<1x128xf32> to vector<256x128xf32>
    %8 = arith.addf %5, %7 : vector<256x128xf32>
    %cst_7 = arith.constant 0.000000e+00 : f32
    %9 = vector.broadcast %cst_7 : f32 to vector<256x128xf32>
    %10 = arith.maximumf %8, %9 : vector<256x128xf32>
    %11 = arith.truncf %10 : vector<256x128xf32> to vector<256x128xbf16>
    %c0_8 = arith.constant 0 : index
    %c0_9 = arith.constant 0 : index
    %12 = vector.load %arg6[%c0_8, %c0_9] : memref<256x128xbf16, #tpu.memory_space<vmem>>, vector<256x128xbf16>
    tpu.vector_store %arg6[%c0_8, %c0_9], %11 {strides = array<i32>} : memref<256x128xbf16, #tpu.memory_space<vmem>>, vector<256x128xbf16>,
    return
  }
  func.func @transform_0(%arg0: i32, %arg1: i32) -> (i32, i32) {
    %c0_i32 = arith.constant 0 : i32
    %c0_i32_0 = arith.constant 0 : i32
    return %arg0, %c0_i32 : i32, i32
  }
  func.func @transform_1(%arg0: i32, %arg1: i32) -> (i32, i32) {
    %c0_i32 = arith.constant 0 : i32
    %c0_i32_0 = arith.constant 0 : i32
    return %c0_i32, %arg1 : i32, i32
  }
  func.func @transform_2(%arg0: i32, %arg1: i32) -> (i32, i32) {
    %c0_i32 = arith.constant 0 : i32
    %c0_i32_0 = arith.constant 0 : i32
    return %c0_i32, %arg1 : i32, i32
  }
  func.func @transform_3(%arg0: i32, %arg1: i32) -> (i32, i32) {
    %c0_i32 = arith.constant 0 : i32
    %c0_i32_0 = arith.constant 0 : i32
    return %c0_i32, %arg1 : i32, i32
  }
  func.func @transform_4(%arg0: i32, %arg1: i32) -> (i32, i32) {
    %c0_i32 = arith.constant 0 : i32
    return %arg0, %arg1 : i32, i32
  }
}

</mosaic_0001>

<llo_original>
// kernel: _conv_bn_act_impl.1
$region0: #{_conv_bn_act_impl.1}
  #allocation0 [shape = 'u32[]', space=smem, size = 0x4, offset = 0x4, fixed_abs, tag = 'smem constant byte address 0x4 - core index']
  #allocation1 [shape = 'u32[144,128]{1,0:T(1,128)}', space=vmem, size = 0x12000, scoped, tag = 'internal scratch']
  %s0 = inlined_call_operand.vmem [shape: bf16[512,256], index: 0, kind: input, shape index: {}]
  %s1 = inlined_call_operand.vmem [shape: bf16[256,128], index: 1, kind: input, shape index: {}]
  %s2 = inlined_call_operand.vmem [shape: f32[1,128], index: 2, kind: input, shape index: {}]
  %s3 = inlined_call_operand.vmem [shape: f32[1,128], index: 3, kind: input, shape index: {}]
  %s4 = inlined_call_operand.hbm [shape: bf16[512,128], index: 4, kind: output, shape index: {}]
  %s5 = sld [smem:[#allocation0]]
  $region49: #{_conv_bn_act_impl.1} parent=0
    _
  %s7 = ssub.s32 1, %s5
  %s8 = scalar_select 0, %s7, %s5
  $region1: #{_conv_bn_act_impl.1} parent=0
    #allocation2 [shape = 'u8[131072]{0}', space=vmem, size = 0x20000, scoped, tag = 'output window, operand 0']
    #allocation3 [shape = 's32[2]{0}', space=sflag, size = 0x8, scoped, tag = 'scoped memory for _conv_bn_act_impl.1']
    %9 = vsyncpa [#allocation3], 0
    %s10 = scalar_lea.sflag [#allocation3], 1
    %11 = vsyncpa %s10, 0
    loop: start=0, step=1, limit=4
    $region2: #{_conv_bn_act_impl.1} parent=1 // loop_pre_header
      _
    $region3: #{_conv_bn_act_impl.1} parent=1 // loop_header
      %s13 = sphi 0, %s17
      %p14 = scmp.ge.s32.totalorder %s13, 4
      %s20 = sphi 0, %s32
      %s21 = sphi 0, %s28
      %s22 = sphi 0, %s20
      %s23 = sphi 0, %s21
      %s24 = sphi 0, %s22
      %s25 = sphi 0, %s23
      %s35 = sphi 0, %s37
      %s38 = sphi 0, %s35
      %s39 = sphi 0, %s38
      %s55 = sphi 0, %s39
      %s61 = sphi 0, %s63
      %s64 = sphi 0, %s61
      %s65 = sphi 0, %s64
      %s81 = sphi 0, %s65
      %s87 = sphi 0, %s89
      %s90 = sphi 0, %s87
      %s91 = sphi 0, %s90
      %s107 = sphi 0, %s91
      %s113 = sphi 0, %s115
      %s116 = sphi 0, %s113
      %s117 = sphi 0, %s116
      %s133 = sphi 0, %s117
      %s141 = sphi 0, %s143
      %s144 = sphi 0, %s141
      %s145 = sphi 0, %s144
      %s161 = sphi 0, %s145
    $region4: #{_conv_bn_act_impl.1} parent=1 // loop_header_branch
      %16 = sbr.rel (%p14) target = $region8
    $region5: #{_conv_bn_act_impl.1} parent=1 // loop_body
      %s18 = ssub.s32 %s13, 1
      %s19 = ssub.s32 %s13, 2
      %s26 = sadd.s32 1, %s21
      %p27 = scmp.ge.s32.totalorder %s26, 1
      %s28 = scalar_select %p27, 0, %s26
      %s29 = sadd.s32 1, %s20
      %s30 = scalar_select %p27, %s29, %s20
      %p31 = scmp.ge.s32.totalorder %s30, 2
      %s32 = scalar_select %p31, 0, %s30
      %s33 = ssub.s32 %s20, %s32
      %p34 = scmp.eq.s32.totalorder %s33, 0
      %s36 = sadd.s32 %s35, 1
      %s37 = scalar_select %p34, %s35, %s36
      %p40 = pneg %p34
      %p41 = scmp.eq.s32.totalorder %s13, 1
      %p42 = por %p40, %p41
      %p43 = scmp.ne.s32.totalorder %s35, %s38
      %p44 = scmp.eq.s32.totalorder %s13, 0
      %p45 = por %p43, %p44
      %p46 = scmp.ne.s32.totalorder %s35, %s38
      %p47 = scmp.eq.s32.totalorder %s18, 1
      %p48 = por %p46, %p47
      %p49 = scmp.ne.s32.totalorder %s38, %s39
      %p50 = scmp.eq.s32.totalorder %s18, 0
      %p51 = por %p49, %p50
      %p52 = scmp.ne.s32.totalorder %s38, %s39
      %p53 = scmp.eq.s32.totalorder %s19, 1
      %p54 = por %p52, %p53
      %p56 = scmp.ne.s32.totalorder %s39, %s55
      %p57 = scmp.eq.s32.totalorder %s19, 0
      %p58 = por %p56, %p57
      %s59 = ssub.s32 %s21, %s28
      %p60 = scmp.eq.s32.totalorder %s59, 0
      %s62 = sadd.s32 %s61, 1
      %s63 = scalar_select %p60, %s61, %s62
      %p66 = pneg %p60
      %p67 = scmp.eq.s32.totalorder %s13, 1
      %p68 = por %p66, %p67
      %p69 = scmp.ne.s32.totalorder %s61, %s64
      %p70 = scmp.eq.s32.totalorder %s13, 0
      %p71 = por %p69, %p70
      %p72 = scmp.ne.s32.totalorder %s61, %s64
      %p73 = scmp.eq.s32.totalorder %s18, 1
      %p74 = por %p72, %p73
      %p75 = scmp.ne.s32.totalorder %s64, %s65
      %p76 = scmp.eq.s32.totalorder %s18, 0
      %p77 = por %p75, %p76
      %p78 = scmp.ne.s32.totalorder %s64, %s65
      %p79 = scmp.eq.s32.totalorder %s19, 1
      %p80 = por %p78, %p79
      %p82 = scmp.ne.s32.totalorder %s65, %s81
      %p83 = scmp.eq.s32.totalorder %s19, 0
      %p84 = por %p82, %p83
      %s85 = ssub.s32 %s21, %s28
      %p86 = scmp.eq.s32.totalorder %s85, 0
      %s88 = sadd.s32 %s87, 1
      %s89 = scalar_select %p86, %s87, %s88
      %p92 = pneg %p86
      %p93 = scmp.eq.s32.totalorder %s13, 1
      %p94 = por %p92, %p93
      %p95 = scmp.ne.s32.totalorder %s87, %s90
      %p96 = scmp.eq.s32.totalorder %s13, 0
      %p97 = por %p95, %p96
      %p98 = scmp.ne.s32.totalorder %s87, %s90
      %p99 = scmp.eq.s32.totalorder %s18, 1
      %p100 = por %p98, %p99
      %p101 = scmp.ne.s32.totalorder %s90, %s91
      %p102 = scmp.eq.s32.totalorder %s18, 0
      %p103 = por %p101, %p102
      %p104 = scmp.ne.s32.totalorder %s90, %s91
      %p105 = scmp.eq.s32.totalorder %s19, 1
      %p106 = por %p104, %p105
      %p108 = scmp.ne.s32.totalorder %s91, %s107
      %p109 = scmp.eq.s32.totalorder %s19, 0
      %p110 = por %p108, %p109
      %s111 = ssub.s32 %s21, %s28
      %p112 = scmp.eq.s32.totalorder %s111, 0
      %s114 = sadd.s32 %s113, 1
      %s115 = scalar_select %p112, %s113, %s114
      %p118 = pneg %p112
      %p119 = scmp.eq.s32.totalorder %s13, 1
      %p120 = por %p118, %p119
      %p121 = scmp.ne.s32.totalorder %s113, %s116
      %p122 = scmp.eq.s32.totalorder %s13, 0
      %p123 = por %p121, %p122
      %p124 = scmp.ne.s32.totalorder %s113, %s116
      %p125 = scmp.eq.s32.totalorder %s18, 1
      %p126 = por %p124, %p125
      %p127 = scmp.ne.s32.totalorder %s116, %s117
      %p128 = scmp.eq.s32.totalorder %s18, 0
      %p129 = por %p127, %p128
      %p130 = scmp.ne.s32.totalorder %s116, %s117
      %p131 = scmp.eq.s32.totalorder %s19, 1
      %p132 = por %p130, %p131
      %p134 = scmp.ne.s32.totalorder %s117, %s133
      %p135 = scmp.eq.s32.totalorder %s19, 0
      %p136 = por %p134, %p135
      %s137 = ssub.s32 %s20, %s32
      %s138 = ssub.s32 %s21, %s28
      %s139 = sor.u32 %s137, %s138
      %p140 = scmp.eq.s32.totalorder %s139, 0
      %s142 = sadd.s32 %s141, 1
      %s143 = scalar_select %p140, %s141, %s142
      %p146 = pneg %p140
      %p147 = scmp.eq.s32.totalorder %s13, 1
      %p148 = por %p146, %p147
      %p149 = scmp.ne.s32.totalorder %s141, %s144
      %p150 = scmp.eq.s32.totalorder %s13, 0
      %p151 = por %p149, %p150
      %p152 = scmp.ne.s32.totalorder %s141, %s144
      %p153 = scmp.eq.s32.totalorder %s18, 1
      %p154 = por %p152, %p153
      %p155 = scmp.ne.s32.totalorder %s144, %s145
      %p156 = scmp.eq.s32.totalorder %s18, 0
      %p157 = por %p155, %p156
      %p158 = scmp.ne.s32.totalorder %s144, %s145
      %p159 = scmp.eq.s32.totalorder %s19, 1
      %p160 = por %p158, %p159
      %p162 = scmp.ne.s32.totalorder %s145, %s161
      %p163 = scmp.eq.s32.totalorder %s19, 0
      %p164 = por %p162, %p163
      %p165 = scmp.le.s32.totalorder 1, %s13
      %p166 = scmp.lt.s32.totalorder %s13, 3
      %p167 = pnand %p165, %p166
      %p168 = pneg %p167
      // Predicated region
      $region9: #{_conv_bn_act_impl.1} parent=5 // pred_check
        _
      $region10: #{_conv_bn_act_impl.1} parent=5 // pred_check_branch
        %170 = sbr.rel (%p167) target = $region12
      $region11: #{_conv_bn_act_impl.1} parent=5 // pred_region
        %s171 = ssub.s32 %s13, 1
        // Predicated region
        $region13: #{_conv_bn_act_impl.1} parent=11 // pred_check
          %p172 = pneg %p77
        $region14: #{_conv_bn_act_impl.1} parent=11 // pred_check_branch
          %174 = sbr.rel (%p172) target = $region16
        $region15: #{_conv_bn_act_impl.1} parent=11 // pred_region
          %p175 = scmp.lt.s32.totalorder %s23, 0
          %s176 = scalar_select %p175, %s23, 0
          %s177 = smul.addr %s176, 4
          %s178 = scalar_lea.vmem %s1, %s177
        $region16: #{_conv_bn_act_impl.1} parent=11 // pred_fallthru
          _
        // Predicated region
        $region17: #{_conv_bn_act_impl.1} parent=11 // pred_check
          %p179 = pneg %p103
        $region18: #{_conv_bn_act_impl.1} parent=11 // pred_check_branch
          %181 = sbr.rel (%p179) target = $region20
        $region19: #{_conv_bn_act_impl.1} parent=11 // pred_region
          %p182 = scmp.lt.s32.totalorder %s23, 0
          %s183 = scalar_select %p182, %s23, 0
          %s184 = scalar_lea.vmem %s2, %s183
        $region20: #{_conv_bn_act_impl.1} parent=11 // pred_fallthru
          _
        // Predicated region
        $region21: #{_conv_bn_act_impl.1} parent=11 // pred_check
          %p185 = pneg %p129
        $region22: #{_conv_bn_act_impl.1} parent=11 // pred_check_branch
          %187 = sbr.rel (%p185) target = $region24
        $region23: #{_conv_bn_act_impl.1} parent=11 // pred_region
          %p188 = scmp.lt.s32.totalorder %s23, 0
          %s189 = scalar_select %p188, %s23, 0
          %s190 = scalar_lea.vmem %s3, %s189
        $region24: #{_conv_bn_act_impl.1} parent=11 // pred_fallthru
          _
      $region12: #{_conv_bn_act_impl.1} parent=5 // pred_fallthru
        _
      %p191 = scmp.lt.s32.totalorder %s13, 2
      // Predicated region
      $region25: #{_conv_bn_act_impl.1} parent=5 // pred_check
        %p192 = pneg %p191
      $region26: #{_conv_bn_act_impl.1} parent=5 // pred_check_branch
        %194 = sbr.rel (%p192) target = $region28
      $region27: #{_conv_bn_act_impl.1} parent=5 // pred_region
        // Predicated region
        $region29: #{_conv_bn_act_impl.1} parent=27 // pred_check
          %p195 = pneg %p45
        $region30: #{_conv_bn_act_impl.1} parent=27 // pred_check_branch
          %197 = sbr.rel (%p195) target = $region32
        $region31: #{_conv_bn_act_impl.1} parent=27 // pred_region
          %s198 = smul.u32 32, %s20
          %p199 = scmp.lt.s32.totalorder %s198, 63
          %s200 = scalar_select %p199, %s198, 63
          %s201 = smul.addr %s200, 2
          %s202 = smul.addr %s201, 4
          %s203 = scalar_lea.vmem %s0, %s202
          %s204 = smul.u32 32, %s20
        $region32: #{_conv_bn_act_impl.1} parent=27 // pred_fallthru
          _
      $region28: #{_conv_bn_act_impl.1} parent=5 // pred_fallthru
        _
      %p205 = scmp.le.s32.totalorder 1, %s13
      %p206 = scmp.lt.s32.totalorder %s13, 3
      %p207 = pnand %p205, %p206
      %p208 = pneg %p207
      // Predicated region
      $region33: #{_conv_bn_act_impl.1} parent=5 // pred_check
        _
      $region34: #{_conv_bn_act_impl.1} parent=5 // pred_check_branch
        %210 = sbr.rel (%p207) target = $region36
      $region35: #{_conv_bn_act_impl.1} parent=5 // pred_region
        %s211 = ssub.s32 %s13, 1
        %s212 = smul.u32 32, %s22
        %p213 = scmp.lt.s32.totalorder %s212, 63
        %s214 = scalar_select %p213, %s212, 63
        %s215 = smul.addr %s214, 2
        %s216 = smul.addr %s215, 4
        %s217 = scalar_lea.vmem %s0, %s216
        %p218 = pneg %p51
        %p219 = pneg %p48
        %p220 = scmp.lt.s32.totalorder %s23, 0
        %s221 = scalar_select %p220, %s23, 0
        %s222 = smul.addr %s221, 4
        %s223 = scalar_lea.vmem %s1, %s222
        %p224 = pneg %p77
        %p225 = pneg %p74
        %p226 = scmp.lt.s32.totalorder %s23, 0
        %s227 = scalar_select %p226, %s23, 0
        %s228 = scalar_lea.vmem %s2, %s227
        %p229 = pneg %p103
        %p230 = pneg %p100
        %p231 = scmp.lt.s32.totalorder %s23, 0
        %s232 = scalar_select %p231, %s23, 0
        %s233 = scalar_lea.vmem %s3, %s232
        %p234 = pneg %p129
        %p235 = pneg %p126
        %p236 = pneg %p157
        %p237 = pneg %p154
        %s238 = sand.u32 %s144, 1
        %s239 = scalar_lea.sflag [#allocation3], %s238
        %s240 = sand.u32 %s144, 1
        %s241 = smul.addr %s240, 128
        %s242 = scalar_lea.vmem [#allocation2], %s241
        %s243 = smul.u32 32, %s22
        %p244 = scmp.lt.s32.totalorder %s243, 63
        %s245 = scalar_select %p244, %s243, 63
        %s246 = smul.addr %s245, 2
        %s247 = smul.addr %s246, 4
        %s248 = scalar_lea.vmem %s0, %s247
        %s249 = smul.u32 32, %s22
        %p250 = scmp.lt.s32.totalorder %s23, 0
        %s251 = scalar_select %p250, %s23, 0
        %s252 = smul.addr %s251, 4
        %s253 = scalar_lea.vmem %s1, %s252
        %p254 = scmp.lt.s32.totalorder %s23, 0
        %s255 = scalar_select %p254, %s23, 0
        %s256 = scalar_lea.vmem %s2, %s255
        %p257 = scmp.lt.s32.totalorder %s23, 0
        %s258 = scalar_select %p257, %s23, 0
        %s259 = scalar_lea.vmem %s3, %s258
        %s260 = smul.u32 32, %s22
        %v262 = vld [vmem:[%s248] sm:$0xff]
        %v263 = vld [vmem:[%s248 + $0x8] sm:$0xff]
        %v264 = vld [vmem:[%s248 + $0x10] sm:$0xff]
        %v265 = vld [vmem:[%s248 + $0x18] sm:$0xff]
        %v266 = vld [vmem:[%s248 + $0x20] sm:$0xff]
        %v267 = vld [vmem:[%s248 + $0x28] sm:$0xff]
        %v268 = vld [vmem:[%s248 + $0x30] sm:$0xff]
        %v269 = vld [vmem:[%s248 + $0x38] sm:$0xff]
        %v270 = vld [vmem:[%s248 + $0x40] sm:$0xff]
        %v271 = vld [vmem:[%s248 + $0x48] sm:$0xff]
        %v272 = vld [vmem:[%s248 + $0x50] sm:$0xff]
        %v273 = vld [vmem:[%s248 + $0x58] sm:$0xff]
        %v274 = vld [vmem:[%s248 + $0x60] sm:$0xff]
        %v275 = vld [vmem:[%s248 + $0x68] sm:$0xff]
        %v276 = vld [vmem:[%s248 + $0x70] sm:$0xff]
        %v277 = vld [vmem:[%s248 + $0x78] sm:$0xff]
        %v278 = vld [vmem:[%s248 + $0x80] sm:$0xff]
        %v279 = vld [vmem:[%s248 + $0x88] sm:$0xff]
        %v280 = vld [vmem:[%s248 + $0x90] sm:$0xff]
        %v281 = vld [vmem:[%s248 + $0x98] sm:$0xff]
        %v282 = vld [vmem:[%s248 + $0xa0] sm:$0xff]
        %v283 = vld [vmem:[%s248 + $0xa8] sm:$0xff]
        %v284 = vld [vmem:[%s248 + $0xb0] sm:$0xff]
        %v285 = vld [vmem:[%s248 + $0xb8] sm:$0xff]
        %v286 = vld [vmem:[%s248 + $0xc0] sm:$0xff]
        %v287 = vld [vmem:[%s248 + $0xc8] sm:$0xff]
        %v288 = vld [vmem:[%s248 + $0xd0] sm:$0xff]
        %v289 = vld [vmem:[%s248 + $0xd8] sm:$0xff]
        %v290 = vld [vmem:[%s248 + $0xe0] sm:$0xff]
        %v291 = vld [vmem:[%s248 + $0xe8] sm:$0xff]
        %v292 = vld [vmem:[%s248 + $0xf0] sm:$0xff]
        %v293 = vld [vmem:[%s248 + $0xf8] sm:$0xff]
        %v294 = vld [vmem:[%s253] sm:$0xf]
        %v295 = vld [vmem:[%s253 + $0x4] sm:$0xf]
        %v296 = vld [vmem:[%s253 + $0x8] sm:$0xf]
        %v297 = vld [vmem:[%s253 + $0xc] sm:$0xf]
        %v298 = vld [vmem:[%s253 + $0x10] sm:$0xf]
        %v299 = vld [vmem:[%s253 + $0x14] sm:$0xf]
        %v300 = vld [vmem:[%s253 + $0x18] sm:$0xf]
        %v301 = vld [vmem:[%s253 + $0x1c] sm:$0xf]
        %v302 = vld [vmem:[%s253 + $0x20] sm:$0xf]
        %v303 = vld [vmem:[%s253 + $0x24] sm:$0xf]
        %v304 = vld [vmem:[%s253 + $0x28] sm:$0xf]
        %v305 = vld [vmem:[%s253 + $0x2c] sm:$0xf]
        %v306 = vld [vmem:[%s253 + $0x30] sm:$0xf]
        %v307 = vld [vmem:[%s253 + $0x34] sm:$0xf]
        %v308 = vld [vmem:[%s253 + $0x38] sm:$0xf]
        %v309 = vld [vmem:[%s253 + $0x3c] sm:$0xf]
        %v310 = vld [vmem:[%s253 + $0x40] sm:$0xf]
        %v311 = vld [vmem:[%s253 + $0x44] sm:$0xf]
        %v312 = vld [vmem:[%s253 + $0x48] sm:$0xf]
        %v313 = vld [vmem:[%s253 + $0x4c] sm:$0xf]
        %v314 = vld [vmem:[%s253 + $0x50] sm:$0xf]
        %v315 = vld [vmem:[%s253 + $0x54] sm:$0xf]
        %v316 = vld [vmem:[%s253 + $0x58] sm:$0xf]
        %v317 = vld [vmem:[%s253 + $0x5c] sm:$0xf]
        %v318 = vld [vmem:[%s253 + $0x60] sm:$0xf]
        %v319 = vld [vmem:[%s253 + $0x64] sm:$0xf]
        %v320 = vld [vmem:[%s253 + $0x68] sm:$0xf]
        %v321 = vld [vmem:[%s253 + $0x6c] sm:$0xf]
        %v322 = vld [vmem:[%s253 + $0x70] sm:$0xf]
        %v323 = vld [vmem:[%s253 + $0x74] sm:$0xf]
        %v324 = vld [vmem:[%s253 + $0x78] sm:$0xf]
        %v325 = vld [vmem:[%s253 + $0x7c] sm:$0xf]
        %v358 = vunpack.c.l.b16 %v262
        %v359 = vunpack.c.h.b16 %v262
        %v360 = vunpack.c.l.b16 %v263
        %v361 = vunpack.c.h.b16 %v263
        %v362 = vunpack.c.l.b16 %v264
        %v363 = vunpack.c.h.b16 %v264
        %v364 = vunpack.c.l.b16 %v265
        %v365 = vunpack.c.h.b16 %v265
        %v366 = vunpack.c.l.b16 %v266
        %v367 = vunpack.c.h.b16 %v266
        %v368 = vunpack.c.l.b16 %v267
        %v369 = vunpack.c.h.b16 %v267
        %v370 = vunpack.c.l.b16 %v268
        %v371 = vunpack.c.h.b16 %v268
        %v372 = vunpack.c.l.b16 %v269
        %v373 = vunpack.c.h.b16 %v269
        %v374 = vunpack.c.l.b16 %v270
        %v375 = vunpack.c.h.b16 %v270
        %v376 = vunpack.c.l.b16 %v271
        %v377 = vunpack.c.h.b16 %v271
        %v378 = vunpack.c.l.b16 %v272
        %v379 = vunpack.c.h.b16 %v272
        %v380 = vunpack.c.l.b16 %v273
        %v381 = vunpack.c.h.b16 %v273
        %v382 = vunpack.c.l.b16 %v274
        %v383 = vunpack.c.h.b16 %v274
        %v384 = vunpack.c.l.b16 %v275
        %v385 = vunpack.c.h.b16 %v275
        %v386 = vunpack.c.l.b16 %v276
        %v387 = vunpack.c.h.b16 %v276
        %v388 = vunpack.c.l.b16 %v277
        %v389 = vunpack.c.h.b16 %v277
        %v390 = vunpack.c.l.b16 %v278
        %v391 = vunpack.c.h.b16 %v278
        %v392 = vunpack.c.l.b16 %v279
        %v393 = vunpack.c.h.b16 %v279
        %v394 = vunpack.c.l.b16 %v280
        %v395 = vunpack.c.h.b16 %v280
        %v396 = vunpack.c.l.b16 %v281
        %v397 = vunpack.c.h.b16 %v281
        %v398 = vunpack.c.l.b16 %v282
        %v399 = vunpack.c.h.b16 %v282
        %v400 = vunpack.c.l.b16 %v283
        %v401 = vunpack.c.h.b16 %v283
        %v402 = vunpack.c.l.b16 %v284
        %v403 = vunpack.c.h.b16 %v284
        %v404 = vunpack.c.l.b16 %v285
        %v405 = vunpack.c.h.b16 %v285
        %v406 = vunpack.c.l.b16 %v286
        %v407 = vunpack.c.h.b16 %v286
        %v408 = vunpack.c.l.b16 %v287
        %v409 = vunpack.c.h.b16 %v287
        %v410 = vunpack.c.l.b16 %v288
        %v411 = vunpack.c.h.b16 %v288
        %v412 = vunpack.c.l.b16 %v289
        %v413 = vunpack.c.h.b16 %v289
        %v414 = vunpack.c.l.b16 %v290
        %v415 = vunpack.c.h.b16 %v290
        %v416 = vunpack.c.l.b16 %v291
        %v417 = vunpack.c.h.b16 %v291
        %v418 = vunpack.c.l.b16 %v292
        %v419 = vunpack.c.h.b16 %v292
        %v420 = vunpack.c.l.b16 %v293
        %v421 = vunpack.c.h.b16 %v293
        %v422 = vpack.c.b16 %v360, %v358
        %v423 = vpack.c.b16 %v361, %v359
        %v424 = vpack.c.b16 %v364, %v362
        %v425 = vpack.c.b16 %v365, %v363
        %v426 = vpack.c.b16 %v368, %v366
        %v427 = vpack.c.b16 %v369, %v367
        %v428 = vpack.c.b16 %v372, %v370
        %v429 = vpack.c.b16 %v373, %v371
        %v430 = vpack.c.b16 %v376, %v374
        %v431 = vpack.c.b16 %v377, %v375
        %v432 = vpack.c.b16 %v380, %v378
        %v433 = vpack.c.b16 %v381, %v379
        %v434 = vpack.c.b16 %v384, %v382
        %v435 = vpack.c.b16 %v385, %v383
        %v436 = vpack.c.b16 %v388, %v386
        %v437 = vpack.c.b16 %v389, %v387
        %v438 = vpack.c.b16 %v392, %v390
        %v439 = vpack.c.b16 %v393, %v391
        %v440 = vpack.c.b16 %v396, %v394
        %v441 = vpack.c.b16 %v397, %v395
        %v442 = vpack.c.b16 %v400, %v398
        %v443 = vpack.c.b16 %v401, %v399
        %v444 = vpack.c.b16 %v404, %v402
        %v445 = vpack.c.b16 %v405, %v403
        %v446 = vpack.c.b16 %v408, %v406
        %v447 = vpack.c.b16 %v409, %v407
        %v448 = vpack.c.b16 %v412, %v410
        %v449 = vpack.c.b16 %v413, %v411
        %v450 = vpack.c.b16 %v416, %v414
        %v451 = vpack.c.b16 %v417, %v415
        %v452 = vpack.c.b16 %v420, %v418
        %v453 = vpack.c.b16 %v421, %v419
        %v518 = vunpack.c.l.b16 %v294
        %v519 = vunpack.c.l.b16 %v295
        %v520 = vunpack.c.l.b16 %v296
        %v521 = vunpack.c.l.b16 %v297
        %v522 = vunpack.c.l.b16 %v298
        %v523 = vunpack.c.l.b16 %v299
        %v524 = vunpack.c.l.b16 %v300
        %v525 = vunpack.c.l.b16 %v301
        %v526 = vunpack.c.l.b16 %v302
        %v527 = vunpack.c.l.b16 %v303
        %v528 = vunpack.c.l.b16 %v304
        %v529 = vunpack.c.l.b16 %v305
        %v530 = vunpack.c.l.b16 %v306
        %v531 = vunpack.c.l.b16 %v307
        %v532 = vunpack.c.l.b16 %v308
        %v533 = vunpack.c.l.b16 %v309
        %v534 = vunpack.c.l.b16 %v310
        %v535 = vunpack.c.l.b16 %v311
        %v536 = vunpack.c.l.b16 %v312
        %v537 = vunpack.c.l.b16 %v313
        %v538 = vunpack.c.l.b16 %v314
        %v539 = vunpack.c.l.b16 %v315
        %v540 = vunpack.c.l.b16 %v316
        %v541 = vunpack.c.l.b16 %v317
        %v542 = vunpack.c.l.b16 %v318
        %v543 = vunpack.c.l.b16 %v319
        %v544 = vunpack.c.l.b16 %v320
        %v545 = vunpack.c.l.b16 %v321
        %v546 = vunpack.c.l.b16 %v322
        %v547 = vunpack.c.l.b16 %v323
        %v548 = vunpack.c.l.b16 %v324
        %v549 = vunpack.c.l.b16 %v325
        %v550 = vpack.c.b16 %v519, %v518
        %v551 = vpack.c.b16 %v521, %v520
        %v552 = vpack.c.b16 %v523, %v522
        %v553 = vpack.c.b16 %v525, %v524
        %v554 = vpack.c.b16 %v527, %v526
        %v555 = vpack.c.b16 %v529, %v528
        %v556 = vpack.c.b16 %v531, %v530
        %v557 = vpack.c.b16 %v533, %v532
        %v558 = vpack.c.b16 %v535, %v534
        %v559 = vpack.c.b16 %v537, %v536
        %v560 = vpack.c.b16 %v539, %v538
        %v561 = vpack.c.b16 %v541, %v540
        %v562 = vpack.c.b16 %v543, %v542
        %v563 = vpack.c.b16 %v545, %v544
        %v564 = vpack.c.b16 %v547, %v546
        %v565 = vpack.c.b16 %v549, %v548
        %582 = vmatprep.subr.bf16.mxu0 0
        %583 = vmatpush1.bf16.msra.mxu0 %v557
        %584 = vmatprep.subr.bf16.mxu0 0
        %585 = vmatpush1.bf16.msra.mxu0 %v556
        %586 = vmatprep.subr.bf16.mxu0 0
        %587 = vmatpush1.bf16.msra.mxu0 %v555
        %588 = vmatprep.subr.bf16.mxu0 0
        %589 = vmatpush1.bf16.msra.mxu0 %v554
        %590 = vmatprep.subr.bf16.mxu0 0
        %591 = vmatpush1.bf16.msra.mxu0 %v553
        %592 = vmatprep.subr.bf16.mxu0 0
        %593 = vmatpush1.bf16.msra.mxu0 %v552
        %594 = vmatprep.subr.bf16.mxu0 0
        %595 = vmatpush1.bf16.msra.mxu0 %v551
        %596 = vmatprep.subr.bf16.mxu0 0
        %597 = vmatpush1.bf16.msra.mxu0 %v550
        %598 = vmatprep.subr.bf16.mxu0 0
        %599 = vmatpush2.bf16.msra.mxu0 %v565
        %600 = vmatprep.subr.bf16.mxu0 0
        %601 = vmatpush2.bf16.msra.mxu0 %v564
        %602 = vmatprep.subr.bf16.mxu0 0
        %603 = vmatpush2.bf16.msra.mxu0 %v563
        %604 = vmatprep.subr.bf16.mxu0 0
        %605 = vmatpush2.bf16.msra.mxu0 %v562
        %606 = vmatprep.subr.bf16.mxu0 0
        %607 = vmatpush2.bf16.msra.mxu0 %v561
        %608 = vmatprep.subr.bf16.mxu0 0
        %609 = vmatpush2.bf16.msra.mxu0 %v560
        %610 = vmatprep.subr.bf16.mxu0 0
        %611 = vmatpush2.bf16.msra.mxu0 %v559
        %612 = vmatprep.subr.bf16.mxu0 0
        %613 = vmatpush2.bf16.msra.mxu0 %v558
        %614 = vmatprep.mubr.bf16.mxu0 %v423
        %615 = vmatmul.mubr.bf16.gmra.mxu0 %v422
        %v616 = vpop.f32.mrf.mxu0
        %v617 = vadd.f32 0.0, %v616
        %v618 = vpop.f32.mrf.mxu0
        %v619 = vpop.f32.mrf.mxu0
        %v620 = vadd.f32 0.0, %v619
        %v621 = vpop.f32.mrf.mxu0
        %622 = vmatprep.mubr.bf16.mxu0 %v425
        %623 = vmatmul.mubr.bf16.gmra.mxu0 %v424
        %v624 = vpop.f32.mrf.mxu0
        %v625 = vadd.f32 0.0, %v624
        %v626 = vpop.f32.mrf.mxu0
        %v627 = vpop.f32.mrf.mxu0
        %v628 = vadd.f32 0.0, %v627
        %v629 = vpop.f32.mrf.mxu0
        %630 = vmatprep.mubr.bf16.mxu0 %v427
        %631 = vmatmul.mubr.bf16.gmra.mxu0 %v426
        %v632 = vpop.f32.mrf.mxu0
        %v633 = vadd.f32 0.0, %v632
        %v634 = vpop.f32.mrf.mxu0
        %v635 = vpop.f32.mrf.mxu0
        %v636 = vadd.f32 0.0, %v635
        %v637 = vpop.f32.mrf.mxu0
        %638 = vmatprep.mubr.bf16.mxu0 %v429
        %639 = vmatmul.mubr.bf16.gmra.mxu0 %v428
        %v640 = vpop.f32.mrf.mxu0
        %v641 = vadd.f32 0.0, %v640
        %v642 = vpop.f32.mrf.mxu0
        %v643 = vpop.f32.mrf.mxu0
        %v644 = vadd.f32 0.0, %v643
        %v645 = vpop.f32.mrf.mxu0
        %646 = vmatprep.mubr.bf16.mxu0 %v431
        %647 = vmatmul.mubr.bf16.gmra.mxu0 %v430
        %v648 = vpop.f32.mrf.mxu0
        %v649 = vadd.f32 0.0, %v648
        %v650 = vpop.f32.mrf.mxu0
        %v651 = vpop.f32.mrf.mxu0
        %v652 = vadd.f32 0.0, %v651
        %v653 = vpop.f32.mrf.mxu0
        %654 = vmatprep.mubr.bf16.mxu0 %v433
        %655 = vmatmul.mubr.bf16.gmra.mxu0 %v432
        %v656 = vpop.f32.mrf.mxu0
        %v657 = vadd.f32 0.0, %v656
        %v658 = vpop.f32.mrf.mxu0
        %v659 = vpop.f32.mrf.mxu0
        %v660 = vadd.f32 0.0, %v659
        %v661 = vpop.f32.mrf.mxu0
        %662 = vmatprep.mubr.bf16.mxu0 %v435
        %663 = vmatmul.mubr.bf16.gmra.mxu0 %v434
        %v664 = vpop.f32.mrf.mxu0
        %v665 = vadd.f32 0.0, %v664
        %v666 = vpop.f32.mrf.mxu0
        %v667 = vpop.f32.mrf.mxu0
        %v668 = vadd.f32 0.0, %v667
        %v669 = vpop.f32.mrf.mxu0
        %670 = vmatprep.mubr.bf16.mxu0 %v437
        %671 = vmatmul.mubr.bf16.gmra.mxu0 %v436
        %v672 = vpop.f32.mrf.mxu0
        %v673 = vadd.f32 0.0, %v672
        %v674 = vpop.f32.mrf.mxu0
        %v675 = vpop.f32.mrf.mxu0
        %v676 = vadd.f32 0.0, %v675
        %v677 = vpop.f32.mrf.mxu0
        %678 = vmatprep.mubr.bf16.mxu0 %v439
        %679 = vmatmul.mubr.bf16.gmra.mxu0 %v438
        %v680 = vpop.f32.mrf.mxu0
        %v681 = vadd.f32 0.0, %v680
        %v682 = vpop.f32.mrf.mxu0
        %v683 = vpop.f32.mrf.mxu0
        %v684 = vadd.f32 0.0, %v683
        %v685 = vpop.f32.mrf.mxu0
        %686 = vmatprep.mubr.bf16.mxu0 %v441
        %687 = vmatmul.mubr.bf16.gmra.mxu0 %v440
        %v688 = vpop.f32.mrf.mxu0
        %v689 = vadd.f32 0.0, %v688
        %v690 = vpop.f32.mrf.mxu0
        %v691 = vpop.f32.mrf.mxu0
        %v692 = vadd.f32 0.0, %v691
        %v693 = vpop.f32.mrf.mxu0
        %694 = vmatprep.mubr.bf16.mxu0 %v443
        %695 = vmatmul.mubr.bf16.gmra.mxu0 %v442
        %v696 = vpop.f32.mrf.mxu0
        %v697 = vadd.f32 0.0, %v696
        %v698 = vpop.f32.mrf.mxu0
        %v699 = vpop.f32.mrf.mxu0
        %v700 = vadd.f32 0.0, %v699
        %v701 = vpop.f32.mrf.mxu0
        %702 = vmatprep.mubr.bf16.mxu0 %v445
        %703 = vmatmul.mubr.bf16.gmra.mxu0 %v444
        %v704 = vpop.f32.mrf.mxu0
        %v705 = vadd.f32 0.0, %v704
        %v706 = vpop.f32.mrf.mxu0
        %v707 = vpop.f32.mrf.mxu0
        %v708 = vadd.f32 0.0, %v707
        %v709 = vpop.f32.mrf.mxu0
        %710 = vmatprep.mubr.bf16.mxu0 %v447
        %711 = vmatmul.mubr.bf16.gmra.mxu0 %v446
        %v712 = vpop.f32.mrf.mxu0
        %v713 = vadd.f32 0.0, %v712
        %v714 = vpop.f32.mrf.mxu0
        %v715 = vpop.f32.mrf.mxu0
        %v716 = vadd.f32 0.0, %v715
        %v717 = vpop.f32.mrf.mxu0
        %718 = vmatprep.mubr.bf16.mxu0 %v449
        %719 = vmatmul.mubr.bf16.gmra.mxu0 %v448
        %v720 = vpop.f32.mrf.mxu0
        %v721 = vadd.f32 0.0, %v720
        %v722 = vpop.f32.mrf.mxu0
        %v723 = vpop.f32.mrf.mxu0
        %v724 = vadd.f32 0.0, %v723
        %v725 = vpop.f32.mrf.mxu0
        %726 = vmatprep.mubr.bf16.mxu0 %v451
        %727 = vmatmul.mubr.bf16.gmra.mxu0 %v450
        %v728 = vpop.f32.mrf.mxu0
        %v729 = vadd.f32 0.0, %v728
        %v730 = vpop.f32.mrf.mxu0
        %v731 = vpop.f32.mrf.mxu0
        %v732 = vadd.f32 0.0, %v731
        %v733 = vpop.f32.mrf.mxu0
        %734 = vmatprep.mubr.bf16.mxu0 %v453
        %735 = vmatmul.mubr.bf16.gmra.mxu0 %v452
        %v736 = vpop.f32.mrf.mxu0
        %v737 = vadd.f32 0.0, %v736
        %v738 = vpop.f32.mrf.mxu0
        %v739 = vpop.f32.mrf.mxu0
        %v740 = vadd.f32 0.0, %v739
        %v741 = vpop.f32.mrf.mxu0
        %742 = vdwg.mxu0
        %v743 = vld [vmem:[%s256] sm:$0x1]
        %v745 = vlaneseq
        %v746 = vshrl.u32 %v745, 7
        %v747 = vsub.s32 0, %v746
        %v748 = vrot.slane %v743, %v747
        %v750 = vmul.f32 %v617, %v748
        %v751 = vmul.f32 %v620, %v748
        %v752 = vmul.f32 %v625, %v748
        %v753 = vmul.f32 %v628, %v748
        %v754 = vmul.f32 %v633, %v748
        %v755 = vmul.f32 %v636, %v748
        %v756 = vmul.f32 %v641, %v748
        %v757 = vmul.f32 %v644, %v748
        %v758 = vmul.f32 %v649, %v748
        %v759 = vmul.f32 %v652, %v748
        %v760 = vmul.f32 %v657, %v748
        %v761 = vmul.f32 %v660, %v748
        %v762 = vmul.f32 %v665, %v748
        %v763 = vmul.f32 %v668, %v748
        %v764 = vmul.f32 %v673, %v748
        %v765 = vmul.f32 %v676, %v748
        %v766 = vmul.f32 %v681, %v748
        %v767 = vmul.f32 %v684, %v748
        %v768 = vmul.f32 %v689, %v748
        %v769 = vmul.f32 %v692, %v748
        %v770 = vmul.f32 %v697, %v748
        %v771 = vmul.f32 %v700, %v748
        %v772 = vmul.f32 %v705, %v748
        %v773 = vmul.f32 %v708, %v748
        %v774 = vmul.f32 %v713, %v748
        %v775 = vmul.f32 %v716, %v748
        %v776 = vmul.f32 %v721, %v748
        %v777 = vmul.f32 %v724, %v748
        %v778 = vmul.f32 %v729, %v748
        %v779 = vmul.f32 %v732, %v748
        %v780 = vmul.f32 %v737, %v748
        %v781 = vmul.f32 %v740, %v748
        %v782 = vld [vmem:[%s259] sm:$0x1]
        %v784 = vlaneseq
        %v785 = vshrl.u32 %v784, 7
        %v786 = vsub.s32 0, %v785
        %v787 = vrot.slane %v782, %v786
        %v789 = vadd.f32 %v750, %v787
        %v790 = vadd.f32 %v751, %v787
        %v791 = vadd.f32 %v752, %v787
        %v792 = vadd.f32 %v753, %v787
        %v793 = vadd.f32 %v754, %v787
        %v794 = vadd.f32 %v755, %v787
        %v795 = vadd.f32 %v756, %v787
        %v796 = vadd.f32 %v757, %v787
        %v797 = vadd.f32 %v758, %v787
        %v798 = vadd.f32 %v759, %v787
        %v799 = vadd.f32 %v760, %v787
        %v800 = vadd.f32 %v761, %v787
        %v801 = vadd.f32 %v762, %v787
        %v802 = vadd.f32 %v763, %v787
        %v803 = vadd.f32 %v764, %v787
        %v804 = vadd.f32 %v765, %v787
        %v805 = vadd.f32 %v766, %v787
        %v806 = vadd.f32 %v767, %v787
        %v807 = vadd.f32 %v768, %v787
        %v808 = vadd.f32 %v769, %v787
        %v809 = vadd.f32 %v770, %v787
        %v810 = vadd.f32 %v771, %v787
        %v811 = vadd.f32 %v772, %v787
        %v812 = vadd.f32 %v773, %v787
        %v813 = vadd.f32 %v774, %v787
        %v814 = vadd.f32 %v775, %v787
        %v815 = vadd.f32 %v776, %v787
        %v816 = vadd.f32 %v777, %v787
        %v817 = vadd.f32 %v778, %v787
        %v818 = vadd.f32 %v779, %v787
        %v819 = vadd.f32 %v780, %v787
        %v820 = vadd.f32 %v781, %v787
        %v821 = vmax.f32 %v789, 0.0
        %v822 = vmax.f32 %v790, 0.0
        %v823 = vmax.f32 %v791, 0.0
        %v824 = vmax.f32 %v792, 0.0
        %v825 = vmax.f32 %v793, 0.0
        %v826 = vmax.f32 %v794, 0.0
        %v827 = vmax.f32 %v795, 0.0
        %v828 = vmax.f32 %v796, 0.0
        %v829 = vmax.f32 %v797, 0.0
        %v830 = vmax.f32 %v798, 0.0
        %v831 = vmax.f32 %v799, 0.0
        %v832 = vmax.f32 %v800, 0.0
        %v833 = vmax.f32 %v801, 0.0
        %v834 = vmax.f32 %v802, 0.0
        %v835 = vmax.f32 %v803, 0.0
        %v836 = vmax.f32 %v804, 0.0
        %v837 = vmax.f32 %v805, 0.0
        %v838 = vmax.f32 %v806, 0.0
        %v839 = vmax.f32 %v807, 0.0
        %v840 = vmax.f32 %v808, 0.0
        %v841 = vmax.f32 %v809, 0.0
        %v842 = vmax.f32 %v810, 0.0
        %v843 = vmax.f32 %v811, 0.0
        %v844 = vmax.f32 %v812, 0.0
        %v845 = vmax.f32 %v813, 0.0
        %v846 = vmax.f32 %v814, 0.0
        %v847 = vmax.f32 %v815, 0.0
        %v848 = vmax.f32 %v816, 0.0
        %v849 = vmax.f32 %v817, 0.0
        %v850 = vmax.f32 %v818, 0.0
        %v851 = vmax.f32 %v819, 0.0
        %v852 = vmax.f32 %v820, 0.0
        %v853 = vpack.c.bf16 %v822, %v821
        %v854 = vpack.c.bf16 %v824, %v823
        %v855 = vpack.c.bf16 %v826, %v825
        %v856 = vpack.c.bf16 %v828, %v827
        %v857 = vpack.c.bf16 %v830, %v829
        %v858 = vpack.c.bf16 %v832, %v831
        %v859 = vpack.c.bf16 %v834, %v833
        %v860 = vpack.c.bf16 %v836, %v835
        %v861 = vpack.c.bf16 %v838, %v837
        %v862 = vpack.c.bf16 %v840, %v839
        %v863 = vpack.c.bf16 %v842, %v841
        %v864 = vpack.c.bf16 %v844, %v843
        %v865 = vpack.c.bf16 %v846, %v845
        %v866 = vpack.c.bf16 %v848, %v847
        %v867 = vpack.c.bf16 %v850, %v849
        %v868 = vpack.c.bf16 %v852, %v851
        %v885 = vunpack.c.l.b16 %v853
        %v886 = vunpack.c.h.b16 %v853
        %v887 = vunpack.c.l.b16 %v854
        %v888 = vunpack.c.h.b16 %v854
        %v889 = vunpack.c.l.b16 %v855
        %v890 = vunpack.c.h.b16 %v855
        %v891 = vunpack.c.l.b16 %v856
        %v892 = vunpack.c.h.b16 %v856
        %v893 = vunpack.c.l.b16 %v857
        %v894 = vunpack.c.h.b16 %v857
        %v895 = vunpack.c.l.b16 %v858
        %v896 = vunpack.c.h.b16 %v858
        %v897 = vunpack.c.l.b16 %v859
        %v898 = vunpack.c.h.b16 %v859
        %v899 = vunpack.c.l.b16 %v860
        %v900 = vunpack.c.h.b16 %v860
        %v901 = vunpack.c.l.b16 %v861
        %v902 = vunpack.c.h.b16 %v861
        %v903 = vunpack.c.l.b16 %v862
        %v904 = vunpack.c.h.b16 %v862
        %v905 = vunpack.c.l.b16 %v863
        %v906 = vunpack.c.h.b16 %v863
        %v907 = vunpack.c.l.b16 %v864
        %v908 = vunpack.c.h.b16 %v864
        %v909 = vunpack.c.l.b16 %v865
        %v910 = vunpack.c.h.b16 %v865
        %v911 = vunpack.c.l.b16 %v866
        %v912 = vunpack.c.h.b16 %v866
        %v913 = vunpack.c.l.b16 %v867
        %v914 = vunpack.c.h.b16 %v867
        %v915 = vunpack.c.l.b16 %v868
        %v916 = vunpack.c.h.b16 %v868
        %v917 = vpack.c.b16 %v885, %v885
        %v918 = vpack.c.b16 %v886, %v886
        %v919 = vpack.c.b16 %v887, %v887
        %v920 = vpack.c.b16 %v888, %v888
        %v921 = vpack.c.b16 %v889, %v889
        %v922 = vpack.c.b16 %v890, %v890
        %v923 = vpack.c.b16 %v891, %v891
        %v924 = vpack.c.b16 %v892, %v892
        %v925 = vpack.c.b16 %v893, %v893
        %v926 = vpack.c.b16 %v894, %v894
        %v927 = vpack.c.b16 %v895, %v895
        %v928 = vpack.c.b16 %v896, %v896
        %v929 = vpack.c.b16 %v897, %v897
        %v930 = vpack.c.b16 %v898, %v898
        %v931 = vpack.c.b16 %v899, %v899
        %v932 = vpack.c.b16 %v900, %v900
        %v933 = vpack.c.b16 %v901, %v901
        %v934 = vpack.c.b16 %v902, %v902
        %v935 = vpack.c.b16 %v903, %v903
        %v936 = vpack.c.b16 %v904, %v904
        %v937 = vpack.c.b16 %v905, %v905
        %v938 = vpack.c.b16 %v906, %v906
        %v939 = vpack.c.b16 %v907, %v907
        %v940 = vpack.c.b16 %v908, %v908
        %v941 = vpack.c.b16 %v909, %v909
        %v942 = vpack.c.b16 %v910, %v910
        %v943 = vpack.c.b16 %v911, %v911
        %v944 = vpack.c.b16 %v912, %v912
        %v945 = vpack.c.b16 %v913, %v913
        %v946 = vpack.c.b16 %v914, %v914
        %v947 = vpack.c.b16 %v915, %v915
        %v948 = vpack.c.b16 %v916, %v916
        %981 = vst [vmem:[%s242] sm:$0xf] %v917
        %982 = vst [vmem:[%s242 + $0x4] sm:$0xf] %v918
        %983 = vst [vmem:[%s242 + $0x8] sm:$0xf] %v919
        %984 = vst [vmem:[%s242 + $0xc] sm:$0xf] %v920
        %985 = vst [vmem:[%s242 + $0x10] sm:$0xf] %v921
        %986 = vst [vmem:[%s242 + $0x14] sm:$0xf] %v922
        %987 = vst [vmem:[%s242 + $0x18] sm:$0xf] %v923
        %988 = vst [vmem:[%s242 + $0x1c] sm:$0xf] %v924
        %989 = vst [vmem:[%s242 + $0x20] sm:$0xf] %v925
        %990 = vst [vmem:[%s242 + $0x24] sm:$0xf] %v926
        %991 = vst [vmem:[%s242 + $0x28] sm:$0xf] %v927
        %992 = vst [vmem:[%s242 + $0x2c] sm:$0xf] %v928
        %993 = vst [vmem:[%s242 + $0x30] sm:$0xf] %v929
        %994 = vst [vmem:[%s242 + $0x34] sm:$0xf] %v930
        %995 = vst [vmem:[%s242 + $0x38] sm:$0xf] %v931
        %996 = vst [vmem:[%s242 + $0x3c] sm:$0xf] %v932
        %997 = vst [vmem:[%s242 + $0x40] sm:$0xf] %v933
        %998 = vst [vmem:[%s242 + $0x44] sm:$0xf] %v934
        %999 = vst [vmem:[%s242 + $0x48] sm:$0xf] %v935
        %1000 = vst [vmem:[%s242 + $0x4c] sm:$0xf] %v936
        %1001 = vst [vmem:[%s242 + $0x50] sm:$0xf] %v937
        %1002 = vst [vmem:[%s242 + $0x54] sm:$0xf] %v938
        %1003 = vst [vmem:[%s242 + $0x58] sm:$0xf] %v939
        %1004 = vst [vmem:[%s242 + $0x5c] sm:$0xf] %v940
        %1005 = vst [vmem:[%s242 + $0x60] sm:$0xf] %v941
        %1006 = vst [vmem:[%s242 + $0x64] sm:$0xf] %v942
        %1007 = vst [vmem:[%s242 + $0x68] sm:$0xf] %v943
        %1008 = vst [vmem:[%s242 + $0x6c] sm:$0xf] %v944
        %1009 = vst [vmem:[%s242 + $0x70] sm:$0xf] %v945
        %1010 = vst [vmem:[%s242 + $0x74] sm:$0xf] %v946
        %1011 = vst [vmem:[%s242 + $0x78] sm:$0xf] %v947
        %1012 = vst [vmem:[%s242 + $0x7c] sm:$0xf] %v948
        %s1013 = sand.u32 %s144, 1
        %s1014 = scalar_lea.sflag [#allocation3], %s1013
        %s1015 = sand.u32 %s144, 1
        %s1016 = smul.addr %s1015, 128
        %s1017 = scalar_lea.vmem [#allocation2], %s1016
        // Predicated region
        $region37: #{_conv_bn_act_impl.1} parent=35 // pred_check
          %p1018 = pneg %p154
        $region38: #{_conv_bn_act_impl.1} parent=35 // pred_check_branch
          %1020 = sbr.rel (%p1018) target = $region40
        $region39: #{_conv_bn_act_impl.1} parent=35 // pred_region
          %s1021 = smul.u32 32, %s22
          %s1023 = ssub.s32 2048, 2048
          %1024 = vsyncadd %s1014, %s1023
          %s1025 = sadd.s32 %s23, %s1021
          %s1026 = smul.addr %s1025, 64
          %s1027 = scalar_lea.hbm %s4, %s1026
          %s1028 = sshll.u32 %s1017, 4
          %s1029 = int_to_ptr.vmem [resolvable:$true] %s1028
          %1034 = dma.vmem_to_hbm [thread:$0]  %s1029, 2048, %s1027, %s1014, 64, 64, 4
        $region40: #{_conv_bn_act_impl.1} parent=35 // pred_fallthru
          _
      $region36: #{_conv_bn_act_impl.1} parent=5 // pred_fallthru
        _
      %p1035 = scmp.le.s32.totalorder 2, %s13
      // Predicated region
      $region41: #{_conv_bn_act_impl.1} parent=5 // pred_check
        %p1036 = pneg %p1035
      $region42: #{_conv_bn_act_impl.1} parent=5 // pred_check_branch
        %1038 = sbr.rel (%p1036) target = $region44
      $region43: #{_conv_bn_act_impl.1} parent=5 // pred_region
        %s1039 = ssub.s32 %s13, 2
        // Predicated region
        $region45: #{_conv_bn_act_impl.1} parent=43 // pred_check
          %p1040 = pneg %p160
        $region46: #{_conv_bn_act_impl.1} parent=43 // pred_check_branch
          %1042 = sbr.rel (%p1040) target = $region48
        $region47: #{_conv_bn_act_impl.1} parent=43 // pred_region
          %s1043 = sand.u32 %s145, 1
          %s1044 = scalar_lea.sflag [#allocation3], %s1043
          %s1045 = sand.u32 %s145, 1
          %s1046 = smul.addr %s1045, 128
          %s1047 = scalar_lea.vmem [#allocation2], %s1046
          %1048 = dma.done %s1044, 2048
        $region48: #{_conv_bn_act_impl.1} parent=43 // pred_fallthru
          _
      $region44: #{_conv_bn_act_impl.1} parent=5 // pred_fallthru
        _
    $region6: #{_conv_bn_act_impl.1} parent=1 // loop_footer
      %s17 = sadd.s32 1, %s13
    $region7: #{_conv_bn_act_impl.1} parent=1 // loop_footer_branch
      %12 = sbr.rel target = $region3
    $region8: #{_conv_bn_act_impl.1} parent=1 // loop_exit
      _
    %1049 = vsyncpa [#allocation3], 1
    %s1050 = scalar_lea.sflag [#allocation3], 1
    %1051 = vsyncpa %s1050, 1

</llo_original>
